<compile_context>
chip_gen: v7x
topology: tpu7x:2x2x1
jax: 0.10.0
libtpu: 0.0.40
codegen_flags: <defaults>
</compile_context>

<pallas_src>
import jax
import jax.numpy as jnp
from jax.experimental import pallas as pl
from jax.experimental.pallas import tpu as pltpu


def _copy_kernel(x_ref, o_ref):
    # Straight VMEM->VMEM copy of the current (block_rows, LANE) tile.
    o_ref[...] = x_ref[...]


def constant_forward(x: jax.Array) -> jax.Array:
    """Identity forward. No kernel: this is the fastest correct implementation."""
    return x


def constant_forward_copy(x: jax.Array,
                          *,
                          max_block_rows: int = 512,
                          max_lane: int = 1024) -> jax.Array:
    """Materialized identity copy via a lane-dense, large-tile Pallas kernel.

    Only use this when a *fresh* output buffer is explicitly required; it costs
    a full HBM read + write (2x array bytes), unlike `constant_forward`.
    """
    orig_shape = x.shape
    orig_dtype = x.dtype
    total = x.size
    if total == 0:
        return x

    # Pick the largest lane width (multiple of 128, <= max_lane) that divides
    # the element count so no padding is needed; otherwise pad up to 128.
    lane = None
    for cand in (max_lane, 512, 256, 128):
        if cand <= max_lane and total % cand == 0:
            lane = cand
            break

    if lane is None:
        lane = 128
        pad = (-total) % lane
        flat = jnp.pad(x.reshape(-1), (0, pad))
    else:
        pad = 0
        flat = x.reshape(-1)

    rows = flat.size // lane
    x2 = flat.reshape(rows, lane)

    # Tile: full row extent if small, otherwise 512 rows (multiple of 8).
    block_rows = rows if rows <= max_block_rows else max_block_rows
    grid = (pl.cdiv(rows, block_rows),)

    out2 = pl.pallas_call(
        _copy_kernel,
        out_shape=jax.ShapeDtypeStruct((rows, lane), orig_dtype),
        grid=grid,
        in_specs=[pl.BlockSpec((block_rows, lane), lambda i: (i, 0))],
        out_specs=pl.BlockSpec((block_rows, lane), lambda i: (i, 0)),
        compiler_params=pltpu.CompilerParams(
            dimension_semantics=("parallel",),
        ),
    )(x2)

    out_flat = out2.reshape(-1)
    if pad:
        out_flat = out_flat[:total]
    return out_flat.reshape(orig_shape)


class ConstantConfig:
    # Mirrors the fields read in Embedding.__init__ (unused by forward).
    def __init__(self, data_dim: int, state_dim: int):
        self.data_dim = data_dim
        self.state_dim = state_dim


class Constant:
    """JAX/Pallas port of the PyTorch `Constant` embedding module."""

    def __init__(self, config: ConstantConfig):
        self.config = config
        self.data_dim = config.data_dim
        self.state_dim = config.state_dim
        # No parameters: Constant.forward is the identity map.

    def __call__(self, x: jax.Array) -> jax.Array:
        # Fast path: identity, no kernel launch, no HBM traffic.
        return constant_forward(x)


if __name__ == "__main__":
    key = jax.random.PRNGKey(0)
    # Small NCHW input consistent with an image-like embedding input.
    x = jax.random.normal(key, (2, 4, 16, 16), dtype=jnp.float32)

    cfg = ConstantConfig(data_dim=4, state_dim=32)
    module = Constant(cfg)

    # Primary (zero-cost) identity path.
    out = module(x)
    out = jax.block_until_ready(out)
    assert out.shape == x.shape and out.dtype == x.dtype
    assert bool(jnp.all(out == x))

    # Exercise the optimized Pallas copy kernel (fresh-buffer variant).
    out_copy = constant_forward_copy(x)
    out_copy = jax.block_until_ready(out_copy)
    assert out_copy.shape == x.shape and out_copy.dtype == x.dtype
    assert bool(jnp.all(out_copy == x))

    print("KERNEL_OK")
</pallas_src>

<mosaic_0001>
module attributes {stable_mosaic.version = 11 : i64} {
  func.func @_copy_kernel(%arg0: i32, %arg1: memref<2x1024xf32, #tpu.memory_space<vmem>>, %arg2: memref<2x1024xf32, #tpu.memory_space<vmem>>) attributes {dimension_semantics = [#tpu.dimension_semantics<parallel>], iteration_bounds = array<i64: 1>, scalar_prefetch = 0 : i64, scratch_operands = 0 : i64, tpu.core_type = #tpu.core_type<tc>, window_params = [{transform_indices = @transform_0, window_bounds = array<i64: 2, 1024>}, {transform_indices = @transform_1, window_bounds = array<i64: 2, 1024>}]} {
    %c0 = arith.constant 0 : index
    %c0_0 = arith.constant 0 : index
    %0 = vector.load %arg1[%c0, %c0_0] : memref<2x1024xf32, #tpu.memory_space<vmem>>, vector<2x1024xf32>
    %c0_1 = arith.constant 0 : index
    %c0_2 = arith.constant 0 : index
    %1 = vector.load %arg2[%c0_1, %c0_2] : memref<2x1024xf32, #tpu.memory_space<vmem>>, vector<2x1024xf32>
    tpu.vector_store %arg2[%c0_1, %c0_2], %0 {strides = array<i32>} : memref<2x1024xf32, #tpu.memory_space<vmem>>, vector<2x1024xf32>,
    return
  }
  func.func @transform_0(%arg0: i32) -> (i32, i32) {
    %c0_i32 = arith.constant 0 : i32
    %c0_i32_0 = arith.constant 0 : i32
    return %arg0, %c0_i32 : i32, i32
  }
  func.func @transform_1(%arg0: i32) -> (i32, i32) {
    %c0_i32 = arith.constant 0 : i32
    %c0_i32_0 = arith.constant 0 : i32
    return %arg0, %c0_i32 : i32, i32
  }
}

</mosaic_0001>

<llo_original>
// kernel: tpu_custom_call.1
$region0: #{tpu_custom_call.1}
  #allocation0 [shape = 'u32[]', space=smem, size = 0x4, offset = 0x4, fixed_abs, tag = 'smem constant byte address 0x4 - core index']
  #allocation1 [shape = 'u32[144,128]{1,0:T(1,128)}', space=vmem, size = 0x12000, scoped, tag = 'internal scratch']
  %s0 = inlined_call_operand.hbm [shape: f32[2,1024], index: 0, kind: input, shape index: {}]
  %s1 = inlined_call_operand.hbm [shape: f32[2,1024], index: 1, kind: output, shape index: {}]
  %s2 = sld [smem:[#allocation0]]
  $region18: #{tpu_custom_call.1} parent=0
    _
  %s4 = ssub.s32 1, %s2
  %s5 = scalar_select 0, %s4, %s2
  $region1: #{tpu_custom_call.1} parent=0
    #allocation2 [shape = 'u8[8192]{0}', space=vmem, size = 0x2000, scoped, tag = 'input window, operand 0, single buffered']
    #allocation3 [shape = 's32[1]{0}', space=sflag, size = 0x4, scoped, tag = 'scoped memory for tpu_custom_call.1']
    #allocation4 [shape = 's32[1]{0}', space=sflag, size = 0x4, scoped, tag = 'scoped memory for tpu_custom_call.1']
    #allocation5 [shape = 'u8[8192]{0}', space=vmem, size = 0x2000, scoped, tag = 'output window, operand 0, single buffered']
    %6 = vsyncpa [#allocation3], 0
    %7 = vsyncpa [#allocation4], 0
    // Predicated region
    $region2: #{tpu_custom_call.1} parent=1 // pred_check
      _
    $region3: #{tpu_custom_call.1} parent=1 // pred_check_branch
      %9 = sbr.rel (0) target = $region5
    $region4: #{tpu_custom_call.1} parent=1 // pred_region
      %s11 = ssub.s32 256, 256
      %12 = vsyncadd [#allocation3], %s11
      %s14 = sshll.u32 [#allocation2], 4
      %s15 = int_to_ptr.vmem [resolvable:$true] %s14
      %17 = dma.hbm_to_vmem [thread:$0]  %s0, 256, %s15, [#allocation3]
    $region5: #{tpu_custom_call.1} parent=1 // pred_fallthru
      _
    // Predicated region
    $region6: #{tpu_custom_call.1} parent=1 // pred_check
      _
    $region7: #{tpu_custom_call.1} parent=1 // pred_check_branch
      %19 = sbr.rel (0) target = $region9
    $region8: #{tpu_custom_call.1} parent=1 // pred_region
      %20 = dma.done [#allocation3], 256
    $region9: #{tpu_custom_call.1} parent=1 // pred_fallthru
      _
    %v21 = vld [vmem:[#allocation2] sm:$0xff]
    %v22 = vld [vmem:[#allocation2 + $0x8] sm:$0xff]
    %23 = vst [vmem:[#allocation5] sm:$0xff] %v21
    %24 = vst [vmem:[#allocation5 + $0x8] sm:$0xff] %v22
    // Predicated region
    $region10: #{tpu_custom_call.1} parent=1 // pred_check
      _
    $region11: #{tpu_custom_call.1} parent=1 // pred_check_branch
      %26 = sbr.rel (0) target = $region13
    $region12: #{tpu_custom_call.1} parent=1 // pred_region
      %s28 = ssub.s32 256, 256
      %29 = vsyncadd [#allocation4], %s28
      %s31 = sshll.u32 [#allocation5], 4
      %s32 = int_to_ptr.vmem [resolvable:$true] %s31
      %34 = dma.vmem_to_hbm [thread:$0]  %s32, 256, %s1, [#allocation4]
    $region13: #{tpu_custom_call.1} parent=1 // pred_fallthru
      _
    // Predicated region
    $region14: #{tpu_custom_call.1} parent=1 // pred_check
      _
    $region15: #{tpu_custom_call.1} parent=1 // pred_check_branch
      %36 = sbr.rel (0) target = $region17
    $region16: #{tpu_custom_call.1} parent=1 // pred_region
      %37 = dma.done [#allocation4], 256
    $region17: #{tpu_custom_call.1} parent=1 // pred_fallthru
      _
    %38 = vsyncpa [#allocation3], 1
    %39 = vsyncpa [#allocation4], 1

</llo_original>
